<compile_context>
chip_gen: v7x
topology: tpu7x:2x2x1
jax: 0.10.0
libtpu: 0.0.40
codegen_flags: <defaults>
</compile_context>

<pallas_src>
import jax
import jax.numpy as jnp
from jax.experimental import pallas as pl
from jax.experimental.pallas import tpu as pltpu


def _blocks_kernel(x_ref, beta_ref, bpk_ref, pL_ref, qk_ref, out_ref, carry_ref):
    """Processes K latency blocks of L time steps for one sublane-packed tile.

    x_ref    : (K, L, St, 128)  input current
    beta_ref : (St, 128)        clamped membrane decay
    bpk_ref  : (L, St, 128)     b * p^(t+1)
    pL_ref   : (St, 128)        p^L
    qk_ref   : (L, St, 128)     p^(L-1-t) / p
    out_ref  : (K, L, St, 128)  output spikes
    carry_ref: (3, St, 128)     rows: (a, v_init, refac_until) carried across
                                sequential grid steps (time axis).

    NOTE: carry correctness relies on grid axis 1 (time super-blocks) being the
    innermost / fastest-varying axis and axis 0 (lane tiles) being the outer,
    core-sharded "parallel" axis.  Do not reorder the grid.
    """
    i = pl.program_id(1)          # time super-block index (sequential carry)
    K = x_ref.shape[0]
    L = x_ref.shape[1]

    # Zero-initialised carry reproduces the PyTorch "i == 0" branch exactly.
    @pl.when(i == 0)
    def _():
        carry_ref[...] = jnp.zeros_like(carry_ref)

    beta = beta_ref[...]          # (St, 128)
    pL = pL_ref[...]              # (St, 128)

    def block_body(kb, carry):
        a, v, refac = carry                      # each (St, 128)

        mem = v
        not_spiked = jnp.ones_like(v)            # 1 until the first spike of the block
        zeros_cnt = jnp.zeros_like(v)            # #steps before the first spike
        a_bump = jnp.zeros_like(v)               # adaptation bump at the spike step

        for t in range(L):                       # L is small (t_latency + 1)
            # refractory masking from the previous block: single vselect
            x_t = x_ref[kb, t]                                       # (St, 128)
            x_t = jnp.where(jnp.float32(t) < refac, 0.0, x_t)
            mem = beta * mem + x_t                                   # LIF integration
            thr = 1.0 + bpk_ref[t] * a                               # adaptive threshold
            # heaviside(mem - thr), gated so only the FIRST crossing spikes
            spk = jnp.where(mem - thr > 0.0, not_spiked, 0.0)
            not_spiked = not_spiked - spk
            out_ref[kb, t] = spk.astype(out_ref.dtype)               # full-tile store
            zeros_cnt = zeros_cnt + not_spiked
            a_bump = a_bump + spk * qk_ref[t]

        spiked = 1.0 - not_spiked                 # == spike_mask of this block
        a_next = pL * a + a_bump                  # == a_kernel[-1]*~m + new_a*m
        v_next = mem * not_spiked                 # v_init for the next block
        refac_next = zeros_cnt * spiked           # first-spike index * mask (float count;
                                                  # exact for L << 2^24)
        return a_next, v_next, refac_next

    init = (carry_ref[0], carry_ref[1], carry_ref[2])
    a, v, refac = jax.lax.fori_loop(0, K, block_body, init)

    carry_ref[0] = a
    carry_ref[1] = v
    carry_ref[2] = refac


def blocks_forward(x, beta_param, p_param, b_param, t_latency,
                   out_dtype=jnp.float32):
    """x: (T, B, N) float32, time-major.  Returns spikes of shape (T, B, N).

    Spike values are exactly {0,1}; pass out_dtype=jnp.bfloat16 to halve HBM
    writeback if the consumer accepts bf16 (in-kernel compute stays f32).
    """
    T, B, N = x.shape
    L = t_latency + 1
    n_blocks = -(-T // L)

    LANE, SUB = 128, 8
    bn = B * N

    # ---- sublane-packed lane layout: (B*N) -> (S_pad, 128), S_pad % 8 == 0 ----
    S_full = -(-bn // LANE)
    S_full = -(-S_full // SUB) * SUB
    if S_full <= SUB:
        S_tile = S_full                 # one 8-sublane tile (tiny problems)
    elif S_full <= 64:
        S_tile = SUB                    # several small tiles -> >=2 lane tiles (v7x: 2 TCs)
    else:
        S_tile = 32
    S_pad = -(-S_full // S_tile) * S_tile
    bn_pad = S_pad * LANE
    n_lane_tiles = S_pad // S_tile

    # ---- K latency blocks fused per sequential grid step ----
    # Target ~2 MiB of input per step -> ~8 MiB in+out double-buffered: big
    # enough to amortise the ~0.35 us/step overhead on v5e/v6e, small enough
    # for v7x's 64 MiB VMEM.
    target_elems = (2 * 1024 * 1024) // 4
    K = max(1, min(n_blocks, target_elems // max(1, L * S_tile * LANE)))
    nb_pad = -(-n_blocks // K) * K
    n_super = nb_pad // K

    # ---- x: (T, B, N) -> (nb_pad, L, S_pad, 128), zero padded ----
    # TODO(synk): optionally convert x to bf16 here (and upcast in-kernel) to
    # halve the dominant HBM read stream on v5e.
    x2 = x.astype(jnp.float32).reshape(T, bn)
    x2 = jnp.pad(x2, ((0, nb_pad * L - T), (0, bn_pad - bn)))
    x4 = x2.reshape(nb_pad, L, S_pad, LANE)

    # ---- parameters (clamping mirrors the @property accessors) ----
    beta = jnp.clip(beta_param.astype(jnp.float32), 0.001, 0.999)       # (N,)
    p = jnp.clip(jnp.abs(p_param.astype(jnp.float32)), 0.0, 0.999)
    b = jnp.clip(jnp.abs(b_param.astype(jnp.float32)), 0.001, 1.0)
    # PyTorch computes 1/p, which is inf for p == 0 (degenerate); guard it.
    inv_p = 1.0 / jnp.maximum(p, 1e-6)

    t_up = jnp.arange(1, L + 1, dtype=jnp.float32)[:, None]             # (L, 1)
    t_dn = jnp.float32(L - 1) - jnp.arange(L, dtype=jnp.float32)[:, None]
    bpk = b[None, :] * (p[None, :] ** t_up)          # (L, N)  b * p^(t+1)
    qk = (p[None, :] ** t_dn) * inv_p[None, :]       # (L, N)  p^(L-1-t) / p
    pL = p[None, :] ** jnp.float32(L)                # (1, N)  p^L

    def to_tiles(arr):
        # (R, N) -> (R, S_pad, 128): broadcast over batch, flatten, pad, pack.
        R = arr.shape[0]
        flat = jnp.broadcast_to(arr[:, None, :], (R, B, N)).reshape(R, bn)
        flat = jnp.pad(flat, ((0, 0), (0, bn_pad - bn)))   # padded lanes get 0 -> no spikes
        return flat.reshape(R, S_pad, LANE)

    beta_t = to_tiles(beta[None, :])[0]     # (S_pad, 128)
    bpk_t = to_tiles(bpk)                   # (L, S_pad, 128)
    pL_t = to_tiles(pL)[0]                  # (S_pad, 128)
    qk_t = to_tiles(qk)                     # (L, S_pad, 128)

    out4 = pl.pallas_call(
        _blocks_kernel,
        out_shape=jax.ShapeDtypeStruct((nb_pad, L, S_pad, LANE), out_dtype),
        grid_spec=pltpu.PrefetchScalarGridSpec(
            num_scalar_prefetch=0,
            # axis 0: lane tiles (independent, megacore-sharded);
            # axis 1: time super-blocks (sequential, carries state).
            grid=(n_lane_tiles, n_super),
            in_specs=[
                pl.BlockSpec((K, L, S_tile, LANE), lambda j, i: (i, 0, j, 0)),  # x
                pl.BlockSpec((S_tile, LANE), lambda j, i: (j, 0)),              # beta
                pl.BlockSpec((L, S_tile, LANE), lambda j, i: (0, j, 0)),        # b*p^(t+1)
                pl.BlockSpec((S_tile, LANE), lambda j, i: (j, 0)),              # p^L
                pl.BlockSpec((L, S_tile, LANE), lambda j, i: (0, j, 0)),        # p^(L-1-t)/p
            ],
            out_specs=pl.BlockSpec((K, L, S_tile, LANE), lambda j, i: (i, 0, j, 0)),
            scratch_shapes=[pltpu.VMEM((3, S_tile, LANE), jnp.float32)],        # (a, v, refac)
        ),
        compiler_params=pltpu.CompilerParams(
            dimension_semantics=("parallel", "arbitrary"),
            vmem_limit_bytes=32 * 1024 * 1024,   # working set ~8-10 MiB; safe on v7x too
        ),
    )(x4, beta_t, bpk_t, pL_t, qk_t)

    out2 = out4.reshape(nb_pad * L, bn_pad)
    if bn_pad == bn:
        out = out2[:T].reshape(T, B, N)          # no lane de-pad copy needed
    else:
        out = out2[:T, :bn].reshape(T, B, N)
    return out
    # TODO(synk): recurrent=True path (rec_weight einsum) not implemented
    # (module default is recurrent=False).


def blocks_reference(x, beta_param, p_param, b_param, t_latency):
    """Pure-JAX mirror of PyTorch Blocks.forward (recurrent=False, adapt=True)."""
    T, B, N = x.shape
    L = t_latency + 1
    n_blocks = -(-T // L)
    t_pad = n_blocks * L - T
    xf = jnp.pad(x.astype(jnp.float32), ((0, t_pad), (0, 0), (0, 0)))

    beta = jnp.clip(beta_param.astype(jnp.float32), 0.001, 0.999)
    p = jnp.clip(jnp.abs(p_param.astype(jnp.float32)), 0.0, 0.999)
    b = jnp.clip(jnp.abs(b_param.astype(jnp.float32)), 0.001, 1.0)
    pk = p[None, :] ** jnp.arange(1, L + 1, dtype=jnp.float32)[:, None]   # (L, N)

    a_kernel = jnp.zeros((L, B, N), jnp.float32)
    v_th = jnp.ones((L, B, N), jnp.float32)
    v_init = jnp.zeros((B, N), jnp.float32)
    int_mem = jnp.zeros((B, N), jnp.float32)
    spikes = jnp.zeros((L, B, N), jnp.float32)
    z = jnp.zeros((L, B, N), jnp.float32)
    outs = []
    for i in range(n_blocks):
        x_slice = xf[i * L:(i + 1) * L]
        if i > 0:
            spike_mask = jnp.max(spikes, axis=0)                        # (B, N) {0,1}
            x_slice = x_slice - (z < spike_mask[None]).astype(jnp.float32) * x_slice
            v_init = int_mem * (1.0 - spike_mask)
            a_at_spike = jnp.sum(a_kernel * spikes, axis=0) + 1.0 / p[None, :]
            decay_steps = jnp.sum((z > 1.0).astype(jnp.float32), axis=0)
            new_a = a_at_spike * (p[None, :] ** decay_steps)
            a = a_kernel[-1] * (1.0 - spike_mask) + new_a * spike_mask
            a_kernel = pk[:, None, :] * a[None]
            v_th = 1.0 + b[None, None, :] * a_kernel
        mem = v_init
        mems = []
        for t in range(L):
            mem = beta[None, :] * mem + x_slice[t]
            mems.append(mem)
        membrane = jnp.stack(mems, axis=0)                              # (L, B, N)
        fs = (membrane - v_th > 0.0).astype(jnp.float32)
        s_cum = jnp.cumsum(fs, axis=0)
        z = jnp.cumsum(s_cum, axis=0)
        spikes = (z == 1.0).astype(jnp.float32)
        int_mem = membrane[-1]
        outs.append(spikes)
    out = jnp.concatenate(outs, axis=0)
    if t_pad:
        out = out[:-t_pad]
    return out


if __name__ == "__main__":
    # Small shapes consistent with the module: t_len=10, batch=2, n_out=32,
    # t_latency=3 (block length 4).
    T, B, N = 10, 2, 32
    t_latency = 3

    key = jax.random.PRNGKey(0)
    x = jax.random.uniform(key, (T, B, N), dtype=jnp.float32, minval=0.0, maxval=1.0)

    # Blocks.__init__ defaults: init_beta=1, init_p=1, b=1.8 (clamped inside).
    beta_param = jnp.ones((N,), jnp.float32)
    p_param = jnp.ones((N,), jnp.float32)
    b_param = jnp.full((N,), 1.8, jnp.float32)

    fwd = jax.jit(lambda xx, bt, pp, bb: blocks_forward(xx, bt, pp, bb, t_latency))
    spikes = jax.block_until_ready(fwd(x, beta_param, p_param, b_param))

    assert spikes.shape == (T, B, N)
    assert bool(jnp.all(jnp.isfinite(spikes)))

    ref = blocks_reference(x, beta_param, p_param, b_param, t_latency)
    assert bool(jnp.array_equal(spikes.astype(jnp.float32), ref)), "kernel/reference mismatch"

    print("KERNEL_OK")
</pallas_src>

<mosaic_0001>
module attributes {stable_mosaic.version = 11 : i64} {
  func.func @_blocks_kernel(%arg0: i32, %arg1: i32, %arg2: memref<3x4x8x128xf32, #tpu.memory_space<vmem>>, %arg3: memref<8x128xf32, #tpu.memory_space<vmem>>, %arg4: memref<4x8x128xf32, #tpu.memory_space<vmem>>, %arg5: memref<8x128xf32, #tpu.memory_space<vmem>>, %arg6: memref<4x8x128xf32, #tpu.memory_space<vmem>>, %arg7: memref<3x4x8x128xf32, #tpu.memory_space<vmem>>, %arg8: memref<3x8x128xf32, #tpu.memory_space<vmem>>) attributes {dimension_semantics = [#tpu.dimension_semantics<parallel>, #tpu.dimension_semantics<arbitrary>], iteration_bounds = array<i64: 1, 1>, scalar_prefetch = 0 : i64, scratch_operands = 1 : i64, tpu.core_type = #tpu.core_type<tc>, window_params = [{transform_indices = @transform_0, window_bounds = array<i64: 3, 4, 8, 128>}, {transform_indices = @transform_1, window_bounds = array<i64: 8, 128>}, {transform_indices = @transform_2, window_bounds = array<i64: 4, 8, 128>}, {transform_indices = @transform_3, window_bounds = array<i64: 8, 128>}, {transform_indices = @transform_4, window_bounds = array<i64: 4, 8, 128>}, {transform_indices = @transform_5, window_bounds = array<i64: 3, 4, 8, 128>}]} {
    %c0_i32 = arith.constant 0 : i32
    %0 = arith.cmpi eq, %arg1, %c0_i32 : i32
    %1 = arith.extui %0 : i1 to i32
    %c0_i32_0 = arith.constant 0 : i32
    %2 = arith.cmpi ne, %1, %c0_i32_0 : i32
    scf.if %2 {
      %cst = arith.constant 0.000000e+00 : f32
      %22 = vector.broadcast %cst : f32 to vector<3x8x128xf32>
      %c0_22 = arith.constant 0 : index
      %c0_23 = arith.constant 0 : index
      %c0_24 = arith.constant 0 : index
      %23 = vector.load %arg8[%c0_22, %c0_23, %c0_24] : memref<3x8x128xf32, #tpu.memory_space<vmem>>, vector<3x8x128xf32>
      tpu.vector_store %arg8[%c0_22, %c0_23, %c0_24], %22 {strides = array<i32>} : memref<3x8x128xf32, #tpu.memory_space<vmem>>, vector<3x8x128xf32>,
    } else {
    }
    %c0 = arith.constant 0 : index
    %c0_1 = arith.constant 0 : index
    %3 = vector.load %arg3[%c0, %c0_1] : memref<8x128xf32, #tpu.memory_space<vmem>>, vector<8x128xf32>
    %c0_2 = arith.constant 0 : index
    %c0_3 = arith.constant 0 : index
    %4 = vector.load %arg5[%c0_2, %c0_3] : memref<8x128xf32, #tpu.memory_space<vmem>>, vector<8x128xf32>
    %c0_4 = arith.constant 0 : index
    %c0_5 = arith.constant 0 : index
    %c0_6 = arith.constant 0 : index
    %5 = vector.load %arg8[%c0_4, %c0_5, %c0_6] : memref<3x8x128xf32, #tpu.memory_space<vmem>>, vector<1x8x128xf32>
    %6 = vector.shape_cast %5 : vector<1x8x128xf32> to vector<8x128xf32>
    %c1 = arith.constant 1 : index
    %c0_7 = arith.constant 0 : index
    %c0_8 = arith.constant 0 : index
    %7 = vector.load %arg8[%c1, %c0_7, %c0_8] : memref<3x8x128xf32, #tpu.memory_space<vmem>>, vector<1x8x128xf32>
    %8 = vector.shape_cast %7 : vector<1x8x128xf32> to vector<8x128xf32>
    %c2 = arith.constant 2 : index
    %c0_9 = arith.constant 0 : index
    %c0_10 = arith.constant 0 : index
    %9 = vector.load %arg8[%c2, %c0_9, %c0_10] : memref<3x8x128xf32, #tpu.memory_space<vmem>>, vector<1x8x128xf32>
    %10 = vector.shape_cast %9 : vector<1x8x128xf32> to vector<8x128xf32>
    %c0_i32_11 = arith.constant 0 : i32
    %c3_i32 = arith.constant 3 : i32
    %11 = arith.addi %c0_i32_11, %c3_i32 : i32
    %c1_i32 = arith.constant 1 : i32
    %12:3 = scf.for %arg9 = %c0_i32_11 to %11 step %c1_i32 iter_args(%arg10 = %6, %arg11 = %8, %arg12 = %10) -> (vector<8x128xf32>, vector<8x128xf32>, vector<8x128xf32>)  : i32 {
      %cst = arith.constant 1.000000e+00 : f32
      %22 = vector.broadcast %cst : f32 to vector<8x128xf32>
      %cst_22 = arith.constant 0.000000e+00 : f32
      %23 = vector.broadcast %cst_22 : f32 to vector<8x128xf32>
      %cst_23 = arith.constant 0.000000e+00 : f32
      %24 = vector.broadcast %cst_23 : f32 to vector<8x128xf32>
      %25 = arith.index_cast %arg9 : i32 to index
      %c0_24 = arith.constant 0 : index
      %c0_25 = arith.constant 0 : index
      %c0_26 = arith.constant 0 : index
      %26 = vector.load %arg2[%25, %c0_24, %c0_25, %c0_26] : memref<3x4x8x128xf32, #tpu.memory_space<vmem>>, vector<1x1x8x128xf32>
      %27 = vector.shape_cast %26 : vector<1x1x8x128xf32> to vector<8x128xf32>
      %cst_27 = arith.constant 0.000000e+00 : f32
      %28 = vector.broadcast %cst_27 : f32 to vector<8x128xf32>
      %29 = arith.cmpf olt, %28, %arg12 : vector<8x128xf32>
      %cst_28 = arith.constant 0.000000e+00 : f32
      %30 = vector.broadcast %cst_28 : f32 to vector<8x128xf32>
      %31 = arith.select %29, %30, %27 : vector<8x128xi1>, vector<8x128xf32>
      %32 = arith.mulf %3, %arg11 : vector<8x128xf32>
      %33 = arith.addf %32, %31 : vector<8x128xf32>
      %c0_29 = arith.constant 0 : index
      %c0_30 = arith.constant 0 : index
      %c0_31 = arith.constant 0 : index
      %34 = vector.load %arg4[%c0_29, %c0_30, %c0_31] : memref<4x8x128xf32, #tpu.memory_space<vmem>>, vector<1x8x128xf32>
      %35 = vector.shape_cast %34 : vector<1x8x128xf32> to vector<8x128xf32>
      %36 = arith.mulf %35, %arg10 : vector<8x128xf32>
      %cst_32 = arith.constant 1.000000e+00 : f32
      %37 = vector.broadcast %cst_32 : f32 to vector<8x128xf32>
      %38 = arith.addf %37, %36 : vector<8x128xf32>
      %39 = arith.subf %33, %38 : vector<8x128xf32>
      %cst_33 = arith.constant 0.000000e+00 : f32
      %40 = vector.broadcast %cst_33 : f32 to vector<8x128xf32>
      %41 = arith.cmpf ogt, %39, %40 : vector<8x128xf32>
      %cst_34 = arith.constant 0.000000e+00 : f32
      %42 = vector.broadcast %cst_34 : f32 to vector<8x128xf32>
      %43 = arith.select %41, %22, %42 : vector<8x128xi1>, vector<8x128xf32>
      %44 = arith.subf %22, %43 : vector<8x128xf32>
      %45 = arith.index_cast %arg9 : i32 to index
      %c0_35 = arith.constant 0 : index
      %c0_36 = arith.constant 0 : index
      %c0_37 = arith.constant 0 : index
      %46 = vector.load %arg7[%45, %c0_35, %c0_36, %c0_37] : memref<3x4x8x128xf32, #tpu.memory_space<vmem>>, vector<1x1x8x128xf32>
      %47 = vector.shape_cast %46 : vector<1x1x8x128xf32> to vector<8x128xf32>
      %48 = vector.shape_cast %43 : vector<8x128xf32> to vector<1x1x8x128xf32>
      tpu.vector_store %arg7[%45, %c0_35, %c0_36, %c0_37], %48 {strides = array<i32>} : memref<3x4x8x128xf32, #tpu.memory_space<vmem>>, vector<1x1x8x128xf32>,
      %49 = arith.addf %23, %44 : vector<8x128xf32>
      %c0_38 = arith.constant 0 : index
      %c0_39 = arith.constant 0 : index
      %c0_40 = arith.constant 0 : index
      %50 = vector.load %arg6[%c0_38, %c0_39, %c0_40] : memref<4x8x128xf32, #tpu.memory_space<vmem>>, vector<1x8x128xf32>
      %51 = vector.shape_cast %50 : vector<1x8x128xf32> to vector<8x128xf32>
      %52 = arith.mulf %43, %51 : vector<8x128xf32>
      %53 = arith.addf %24, %52 : vector<8x128xf32>
      %54 = arith.index_cast %arg9 : i32 to index
      %c1_41 = arith.constant 1 : index
      %c0_42 = arith.constant 0 : index
      %c0_43 = arith.constant 0 : index
      %55 = vector.load %arg2[%54, %c1_41, %c0_42, %c0_43] : memref<3x4x8x128xf32, #tpu.memory_space<vmem>>, vector<1x1x8x128xf32>
      %56 = vector.shape_cast %55 : vector<1x1x8x128xf32> to vector<8x128xf32>
      %cst_44 = arith.constant 1.000000e+00 : f32
      %57 = vector.broadcast %cst_44 : f32 to vector<8x128xf32>
      %58 = arith.cmpf olt, %57, %arg12 : vector<8x128xf32>
      %cst_45 = arith.constant 0.000000e+00 : f32
      %59 = vector.broadcast %cst_45 : f32 to vector<8x128xf32>
      %60 = arith.select %58, %59, %56 : vector<8x128xi1>, vector<8x128xf32>
      %61 = arith.mulf %3, %33 : vector<8x128xf32>
      %62 = arith.addf %61, %60 : vector<8x128xf32>
      %c1_46 = arith.constant 1 : index
      %c0_47 = arith.constant 0 : index
      %c0_48 = arith.constant 0 : index
      %63 = vector.load %arg4[%c1_46, %c0_47, %c0_48] : memref<4x8x128xf32, #tpu.memory_space<vmem>>, vector<1x8x128xf32>
      %64 = vector.shape_cast %63 : vector<1x8x128xf32> to vector<8x128xf32>
      %65 = arith.mulf %64, %arg10 : vector<8x128xf32>
      %cst_49 = arith.constant 1.000000e+00 : f32
      %66 = vector.broadcast %cst_49 : f32 to vector<8x128xf32>
      %67 = arith.addf %66, %65 : vector<8x128xf32>
      %68 = arith.subf %62, %67 : vector<8x128xf32>
      %cst_50 = arith.constant 0.000000e+00 : f32
      %69 = vector.broadcast %cst_50 : f32 to vector<8x128xf32>
      %70 = arith.cmpf ogt, %68, %69 : vector<8x128xf32>
      %cst_51 = arith.constant 0.000000e+00 : f32
      %71 = vector.broadcast %cst_51 : f32 to vector<8x128xf32>
      %72 = arith.select %70, %44, %71 : vector<8x128xi1>, vector<8x128xf32>
      %73 = arith.subf %44, %72 : vector<8x128xf32>
      %74 = arith.index_cast %arg9 : i32 to index
      %c1_52 = arith.constant 1 : index
      %c0_53 = arith.constant 0 : index
      %c0_54 = arith.constant 0 : index
      %75 = vector.load %arg7[%74, %c1_52, %c0_53, %c0_54] : memref<3x4x8x128xf32, #tpu.memory_space<vmem>>, vector<1x1x8x128xf32>
      %76 = vector.shape_cast %75 : vector<1x1x8x128xf32> to vector<8x128xf32>
      %77 = vector.shape_cast %72 : vector<8x128xf32> to vector<1x1x8x128xf32>
      tpu.vector_store %arg7[%74, %c1_52, %c0_53, %c0_54], %77 {strides = array<i32>} : memref<3x4x8x128xf32, #tpu.memory_space<vmem>>, vector<1x1x8x128xf32>,
      %78 = arith.addf %49, %73 : vector<8x128xf32>
      %c1_55 = arith.constant 1 : index
      %c0_56 = arith.constant 0 : index
      %c0_57 = arith.constant 0 : index
      %79 = vector.load %arg6[%c1_55, %c0_56, %c0_57] : memref<4x8x128xf32, #tpu.memory_space<vmem>>, vector<1x8x128xf32>
      %80 = vector.shape_cast %79 : vector<1x8x128xf32> to vector<8x128xf32>
      %81 = arith.mulf %72, %80 : vector<8x128xf32>
      %82 = arith.addf %53, %81 : vector<8x128xf32>
      %83 = arith.index_cast %arg9 : i32 to index
      %c2_58 = arith.constant 2 : index
      %c0_59 = arith.constant 0 : index
      %c0_60 = arith.constant 0 : index
      %84 = vector.load %arg2[%83, %c2_58, %c0_59, %c0_60] : memref<3x4x8x128xf32, #tpu.memory_space<vmem>>, vector<1x1x8x128xf32>
      %85 = vector.shape_cast %84 : vector<1x1x8x128xf32> to vector<8x128xf32>
      %cst_61 = arith.constant 2.000000e+00 : f32
      %86 = vector.broadcast %cst_61 : f32 to vector<8x128xf32>
      %87 = arith.cmpf olt, %86, %arg12 : vector<8x128xf32>
      %cst_62 = arith.constant 0.000000e+00 : f32
      %88 = vector.broadcast %cst_62 : f32 to vector<8x128xf32>
      %89 = arith.select %87, %88, %85 : vector<8x128xi1>, vector<8x128xf32>
      %90 = arith.mulf %3, %62 : vector<8x128xf32>
      %91 = arith.addf %90, %89 : vector<8x128xf32>
      %c2_63 = arith.constant 2 : index
      %c0_64 = arith.constant 0 : index
      %c0_65 = arith.constant 0 : index
      %92 = vector.load %arg4[%c2_63, %c0_64, %c0_65] : memref<4x8x128xf32, #tpu.memory_space<vmem>>, vector<1x8x128xf32>
      %93 = vector.shape_cast %92 : vector<1x8x128xf32> to vector<8x128xf32>
      %94 = arith.mulf %93, %arg10 : vector<8x128xf32>
      %cst_66 = arith.constant 1.000000e+00 : f32
      %95 = vector.broadcast %cst_66 : f32 to vector<8x128xf32>
      %96 = arith.addf %95, %94 : vector<8x128xf32>
      %97 = arith.subf %91, %96 : vector<8x128xf32>
      %cst_67 = arith.constant 0.000000e+00 : f32
      %98 = vector.broadcast %cst_67 : f32 to vector<8x128xf32>
      %99 = arith.cmpf ogt, %97, %98 : vector<8x128xf32>
      %cst_68 = arith.constant 0.000000e+00 : f32
      %100 = vector.broadcast %cst_68 : f32 to vector<8x128xf32>
      %101 = arith.select %99, %73, %100 : vector<8x128xi1>, vector<8x128xf32>
      %102 = arith.subf %73, %101 : vector<8x128xf32>
      %103 = arith.index_cast %arg9 : i32 to index
      %c2_69 = arith.constant 2 : index
      %c0_70 = arith.constant 0 : index
      %c0_71 = arith.constant 0 : index
      %104 = vector.load %arg7[%103, %c2_69, %c0_70, %c0_71] : memref<3x4x8x128xf32, #tpu.memory_space<vmem>>, vector<1x1x8x128xf32>
      %105 = vector.shape_cast %104 : vector<1x1x8x128xf32> to vector<8x128xf32>
      %106 = vector.shape_cast %101 : vector<8x128xf32> to vector<1x1x8x128xf32>
      tpu.vector_store %arg7[%103, %c2_69, %c0_70, %c0_71], %106 {strides = array<i32>} : memref<3x4x8x128xf32, #tpu.memory_space<vmem>>, vector<1x1x8x128xf32>,
      %107 = arith.addf %78, %102 : vector<8x128xf32>
      %c2_72 = arith.constant 2 : index
      %c0_73 = arith.constant 0 : index
      %c0_74 = arith.constant 0 : index
      %108 = vector.load %arg6[%c2_72, %c0_73, %c0_74] : memref<4x8x128xf32, #tpu.memory_space<vmem>>, vector<1x8x128xf32>
      %109 = vector.shape_cast %108 : vector<1x8x128xf32> to vector<8x128xf32>
      %110 = arith.mulf %101, %109 : vector<8x128xf32>
      %111 = arith.addf %82, %110 : vector<8x128xf32>
      %112 = arith.index_cast %arg9 : i32 to index
      %c3 = arith.constant 3 : index
      %c0_75 = arith.constant 0 : index
      %c0_76 = arith.constant 0 : index
      %113 = vector.load %arg2[%112, %c3, %c0_75, %c0_76] : memref<3x4x8x128xf32, #tpu.memory_space<vmem>>, vector<1x1x8x128xf32>
      %114 = vector.shape_cast %113 : vector<1x1x8x128xf32> to vector<8x128xf32>
      %cst_77 = arith.constant 3.000000e+00 : f32
      %115 = vector.broadcast %cst_77 : f32 to vector<8x128xf32>
      %116 = arith.cmpf olt, %115, %arg12 : vector<8x128xf32>
      %cst_78 = arith.constant 0.000000e+00 : f32
      %117 = vector.broadcast %cst_78 : f32 to vector<8x128xf32>
      %118 = arith.select %116, %117, %114 : vector<8x128xi1>, vector<8x128xf32>
      %119 = arith.mulf %3, %91 : vector<8x128xf32>
      %120 = arith.addf %119, %118 : vector<8x128xf32>
      %c3_79 = arith.constant 3 : index
      %c0_80 = arith.constant 0 : index
      %c0_81 = arith.constant 0 : index
      %121 = vector.load %arg4[%c3_79, %c0_80, %c0_81] : memref<4x8x128xf32, #tpu.memory_space<vmem>>, vector<1x8x128xf32>
      %122 = vector.shape_cast %121 : vector<1x8x128xf32> to vector<8x128xf32>
      %123 = arith.mulf %122, %arg10 : vector<8x128xf32>
      %cst_82 = arith.constant 1.000000e+00 : f32
      %124 = vector.broadcast %cst_82 : f32 to vector<8x128xf32>
      %125 = arith.addf %124, %123 : vector<8x128xf32>
      %126 = arith.subf %120, %125 : vector<8x128xf32>
      %cst_83 = arith.constant 0.000000e+00 : f32
      %127 = vector.broadcast %cst_83 : f32 to vector<8x128xf32>
      %128 = arith.cmpf ogt, %126, %127 : vector<8x128xf32>
      %cst_84 = arith.constant 0.000000e+00 : f32
      %129 = vector.broadcast %cst_84 : f32 to vector<8x128xf32>
      %130 = arith.select %128, %102, %129 : vector<8x128xi1>, vector<8x128xf32>
      %131 = arith.subf %102, %130 : vector<8x128xf32>
      %132 = arith.index_cast %arg9 : i32 to index
      %c3_85 = arith.constant 3 : index
      %c0_86 = arith.constant 0 : index
      %c0_87 = arith.constant 0 : index
      %133 = vector.load %arg7[%132, %c3_85, %c0_86, %c0_87] : memref<3x4x8x128xf32, #tpu.memory_space<vmem>>, vector<1x1x8x128xf32>
      %134 = vector.shape_cast %133 : vector<1x1x8x128xf32> to vector<8x128xf32>
      %135 = vector.shape_cast %130 : vector<8x128xf32> to vector<1x1x8x128xf32>
      tpu.vector_store %arg7[%132, %c3_85, %c0_86, %c0_87], %135 {strides = array<i32>} : memref<3x4x8x128xf32, #tpu.memory_space<vmem>>, vector<1x1x8x128xf32>,
      %136 = arith.addf %107, %131 : vector<8x128xf32>
      %c3_88 = arith.constant 3 : index
      %c0_89 = arith.constant 0 : index
      %c0_90 = arith.constant 0 : index
      %137 = vector.load %arg6[%c3_88, %c0_89, %c0_90] : memref<4x8x128xf32, #tpu.memory_space<vmem>>, vector<1x8x128xf32>
      %138 = vector.shape_cast %137 : vector<1x8x128xf32> to vector<8x128xf32>
      %139 = arith.mulf %130, %138 : vector<8x128xf32>
      %140 = arith.addf %111, %139 : vector<8x128xf32>
      %cst_91 = arith.constant 1.000000e+00 : f32
      %141 = vector.broadcast %cst_91 : f32 to vector<8x128xf32>
      %142 = arith.subf %141, %131 : vector<8x128xf32>
      %143 = arith.mulf %4, %arg10 : vector<8x128xf32>
      %144 = arith.addf %143, %140 : vector<8x128xf32>
      %145 = arith.mulf %120, %131 : vector<8x128xf32>
      %146 = arith.mulf %136, %142 : vector<8x128xf32>
      scf.yield %144, %145, %146 : vector<8x128xf32>, vector<8x128xf32>, vector<8x128xf32>
    }
    %c3_i32_12 = arith.constant 3 : i32
    %c0_13 = arith.constant 0 : index
    %c0_14 = arith.constant 0 : index
    %c0_15 = arith.constant 0 : index
    %13 = vector.load %arg8[%c0_13, %c0_14, %c0_15] : memref<3x8x128xf32, #tpu.memory_space<vmem>>, vector<1x8x128xf32>
    %14 = vector.shape_cast %13 : vector<1x8x128xf32> to vector<8x128xf32>
    %15 = vector.shape_cast %12#0 : vector<8x128xf32> to vector<1x8x128xf32>
    tpu.vector_store %arg8[%c0_13, %c0_14, %c0_15], %15 {strides = array<i32>} : memref<3x8x128xf32, #tpu.memory_space<vmem>>, vector<1x8x128xf32>,
    %c1_16 = arith.constant 1 : index
    %c0_17 = arith.constant 0 : index
    %c0_18 = arith.constant 0 : index
    %16 = vector.load %arg8[%c1_16, %c0_17, %c0_18] : memref<3x8x128xf32, #tpu.memory_space<vmem>>, vector<1x8x128xf32>
    %17 = vector.shape_cast %16 : vector<1x8x128xf32> to vector<8x128xf32>
    %18 = vector.shape_cast %12#1 : vector<8x128xf32> to vector<1x8x128xf32>
    tpu.vector_store %arg8[%c1_16, %c0_17, %c0_18], %18 {strides = array<i32>} : memref<3x8x128xf32, #tpu.memory_space<vmem>>, vector<1x8x128xf32>,
    %c2_19 = arith.constant 2 : index
    %c0_20 = arith.constant 0 : index
    %c0_21 = arith.constant 0 : index
    %19 = vector.load %arg8[%c2_19, %c0_20, %c0_21] : memref<3x8x128xf32, #tpu.memory_space<vmem>>, vector<1x8x128xf32>
    %20 = vector.shape_cast %19 : vector<1x8x128xf32> to vector<8x128xf32>
    %21 = vector.shape_cast %12#2 : vector<8x128xf32> to vector<1x8x128xf32>
    tpu.vector_store %arg8[%c2_19, %c0_20, %c0_21], %21 {strides = array<i32>} : memref<3x8x128xf32, #tpu.memory_space<vmem>>, vector<1x8x128xf32>,
    return
  }
  func.func @transform_0(%arg0: i32, %arg1: i32) -> (i32, i32, i32, i32) {
    %c0_i32 = arith.constant 0 : i32
    %c0_i32_0 = arith.constant 0 : i32
    %c0_i32_1 = arith.constant 0 : i32
    return %arg1, %c0_i32, %arg0, %c0_i32_0 : i32, i32, i32, i32
  }
  func.func @transform_1(%arg0: i32, %arg1: i32) -> (i32, i32) {
    %c0_i32 = arith.constant 0 : i32
    %c0_i32_0 = arith.constant 0 : i32
    return %arg0, %c0_i32 : i32, i32
  }
  func.func @transform_2(%arg0: i32, %arg1: i32) -> (i32, i32, i32) {
    %c0_i32 = arith.constant 0 : i32
    %c0_i32_0 = arith.constant 0 : i32
    %c0_i32_1 = arith.constant 0 : i32
    return %c0_i32, %arg0, %c0_i32_0 : i32, i32, i32
  }
  func.func @transform_3(%arg0: i32, %arg1: i32) -> (i32, i32) {
    %c0_i32 = arith.constant 0 : i32
    %c0_i32_0 = arith.constant 0 : i32
    return %arg0, %c0_i32 : i32, i32
  }
  func.func @transform_4(%arg0: i32, %arg1: i32) -> (i32, i32, i32) {
    %c0_i32 = arith.constant 0 : i32
    %c0_i32_0 = arith.constant 0 : i32
    %c0_i32_1 = arith.constant 0 : i32
    return %c0_i32, %arg0, %c0_i32_0 : i32, i32, i32
  }
  func.func @transform_5(%arg0: i32, %arg1: i32) -> (i32, i32, i32, i32) {
    %c0_i32 = arith.constant 0 : i32
    %c0_i32_0 = arith.constant 0 : i32
    %c0_i32_1 = arith.constant 0 : i32
    return %arg1, %c0_i32, %arg0, %c0_i32_0 : i32, i32, i32, i32
  }
}

</mosaic_0001>

<llo_original>
// kernel: _lambda_.1
$region0: #{_lambda_.1}
  #allocation0 [shape = 'u32[]', space=smem, size = 0x4, offset = 0x4, fixed_abs, tag = 'smem constant byte address 0x4 - core index']
  #allocation1 [shape = 'u32[144,128]{1,0:T(1,128)}', space=vmem, size = 0x12000, scoped, tag = 'internal scratch']
  #allocation2 [shape = 'f32[3,8,128]{2,1,0:T(8,128)}', space=vmem, size = 0x3000, scoped, tag = 'scratch operand']
  %s0 = inlined_call_operand.vmem [shape: f32[3,4,8,128], index: 0, kind: input, shape index: {}]
  %s1 = inlined_call_operand.vmem [shape: f32[8,128], index: 1, kind: input, shape index: {}]
  %s2 = inlined_call_operand.vmem [shape: f32[4,8,128], index: 2, kind: input, shape index: {}]
  %s3 = inlined_call_operand.vmem [shape: f32[8,128], index: 3, kind: input, shape index: {}]
  %s4 = inlined_call_operand.vmem [shape: f32[4,8,128], index: 4, kind: input, shape index: {}]
  %s5 = inlined_call_operand.vmem [shape: f32[3,4,8,128], index: 5, kind: output, shape index: {}]
  %s6 = sld [smem:[#allocation0]]
  $region41: #{_lambda_.1} parent=0
    _
  %s8 = ssub.s32 1, %s6
  %s9 = scalar_select 0, %s8, %s6
  // Predicated region
  $region2: #{_lambda_.1} parent=0 // pred_check
    _
  $region3: #{_lambda_.1} parent=0 // pred_check_branch
    %11 = sbr.rel (0) target = $region5
  $region4: #{_lambda_.1} parent=0 // pred_region
    _
  $region5: #{_lambda_.1} parent=0 // pred_fallthru
    _
  // Predicated region
  $region6: #{_lambda_.1} parent=0 // pred_check
    _
  $region7: #{_lambda_.1} parent=0 // pred_check_branch
    %13 = sbr.rel (0) target = $region9
  $region8: #{_lambda_.1} parent=0 // pred_region
    _
  $region9: #{_lambda_.1} parent=0 // pred_fallthru
    _
  // Predicated region
  $region10: #{_lambda_.1} parent=0 // pred_check
    _
  $region11: #{_lambda_.1} parent=0 // pred_check_branch
    %15 = sbr.rel (0) target = $region13
  $region12: #{_lambda_.1} parent=0 // pred_region
    _
  $region13: #{_lambda_.1} parent=0 // pred_fallthru
    _
  // Predicated region
  $region14: #{_lambda_.1} parent=0 // pred_check
    _
  $region15: #{_lambda_.1} parent=0 // pred_check_branch
    %17 = sbr.rel (0) target = $region17
  $region16: #{_lambda_.1} parent=0 // pred_region
    _
  $region17: #{_lambda_.1} parent=0 // pred_fallthru
    _
  // Predicated region
  $region18: #{_lambda_.1} parent=0 // pred_check
    _
  $region19: #{_lambda_.1} parent=0 // pred_check_branch
    %19 = sbr.rel (0) target = $region21
  $region20: #{_lambda_.1} parent=0 // pred_region
    _
  $region21: #{_lambda_.1} parent=0 // pred_fallthru
    _
  %p20 = scmp.eq.s32.totalorder 0, 0
  // Predicated region
  $region22: #{_lambda_.1} parent=0 // pred_check
    %p21 = pneg %p20
  $region23: #{_lambda_.1} parent=0 // pred_check_branch
    %23 = sbr.rel (%p21) target = $region25
  $region24: #{_lambda_.1} parent=0 // pred_region
    %24 = vst [vmem:[#allocation2] sm:$0xff] 0.0
    %25 = vst [vmem:[#allocation2 + $0x8] sm:$0xff] 0.0
    %26 = vst [vmem:[#allocation2 + $0x10] sm:$0xff] 0.0
  $region25: #{_lambda_.1} parent=0 // pred_fallthru
    _
  %v27 = vld [vmem:[%s1] sm:$0xff]
  %v28 = vld [vmem:[%s3] sm:$0xff]
  %v29 = vld [vmem:[#allocation2] sm:$0xff]
  %s30 = scalar_lea.vmem [#allocation2], 8
  %v31 = vld [vmem:[%s30] sm:$0xff]
  %s32 = scalar_lea.vmem [#allocation2], 16
  %v33 = vld [vmem:[%s32] sm:$0xff]
  loop: start=0, step=1, limit=3
  $region26: #{_lambda_.1} parent=0 // loop_pre_header
    _
  $region27: #{_lambda_.1} parent=0 // loop_header
    %s35 = sphi 0, %s39
    %p36 = scmp.ge.s32.totalorder %s35, 3
    %v40 = vphi %v29, %v131
    %v41 = vphi %v31, %v132
    %v42 = vphi %v33, %v133
  $region28: #{_lambda_.1} parent=0 // loop_header_branch
    %38 = sbr.rel (%p36) target = $region32
  $region29: #{_lambda_.1} parent=0 // loop_body
    %s43 = smul.u32 %s35, 32
    %s44 = scalar_lea.vmem %s0, %s43
    %v45 = vld [vmem:[%s44] sm:$0xff]
    %vm46 = vcmp.lt.f32.partialorder 0.0, %v42
    %v47 = vsel %vm46, 0.0, %v45
    %v48 = vmul.f32 %v27, %v41
    %v49 = vadd.f32 %v48, %v47
    %v50 = vld [vmem:[%s2] sm:$0xff]
    %v51 = vmul.f32 %v50, %v40
    %v52 = vadd.f32 %v51, 1.0
    %v53 = vsub.f32 %v49, %v52
    %vm54 = vcmp.gt.f32.partialorder %v53, 0.0
    %v55 = vsel %vm54, 1.0, 0.0
    %v56 = vsub.f32 1.0, %v55
    %s57 = scalar_lea.vmem %s5, %s43
    %58 = vst [vmem:[%s57] sm:$0xff] %v55
    %v59 = vadd.f32 %v56, 0.0
    %v60 = vld [vmem:[%s4] sm:$0xff]
    %v61 = vmul.f32 %v55, %v60
    %v62 = vadd.f32 %v61, 0.0
    %s63 = sadd.s32 8, %s43
    %s64 = scalar_lea.vmem %s0, %s63
    %v65 = vld [vmem:[%s64] sm:$0xff]
    %vm66 = vcmp.lt.f32.partialorder 1.0, %v42
    %v67 = vsel %vm66, 0.0, %v65
    %v68 = vmul.f32 %v27, %v49
    %v69 = vadd.f32 %v68, %v67
    %s70 = scalar_lea.vmem %s2, 8
    %v71 = vld [vmem:[%s70] sm:$0xff]
    %v72 = vmul.f32 %v71, %v40
    %v73 = vadd.f32 %v72, 1.0
    %v74 = vsub.f32 %v69, %v73
    %vm75 = vcmp.gt.f32.partialorder %v74, 0.0
    %v76 = vsel %vm75, %v56, 0.0
    %v77 = vsub.f32 %v56, %v76
    %s78 = scalar_lea.vmem %s5, %s63
    %79 = vst [vmem:[%s78] sm:$0xff] %v76
    %v80 = vadd.f32 %v59, %v77
    %s81 = scalar_lea.vmem %s4, 8
    %v82 = vld [vmem:[%s81] sm:$0xff]
    %v83 = vmul.f32 %v76, %v82
    %v84 = vadd.f32 %v62, %v83
    %s85 = sadd.s32 16, %s43
    %s86 = scalar_lea.vmem %s0, %s85
    %v87 = vld [vmem:[%s86] sm:$0xff]
    %vm88 = vcmp.lt.f32.partialorder 2.0, %v42
    %v89 = vsel %vm88, 0.0, %v87
    %v90 = vmul.f32 %v27, %v69
    %v91 = vadd.f32 %v90, %v89
    %s92 = scalar_lea.vmem %s2, 16
    %v93 = vld [vmem:[%s92] sm:$0xff]
    %v94 = vmul.f32 %v93, %v40
    %v95 = vadd.f32 %v94, 1.0
    %v96 = vsub.f32 %v91, %v95
    %vm97 = vcmp.gt.f32.partialorder %v96, 0.0
    %v98 = vsel %vm97, %v77, 0.0
    %v99 = vsub.f32 %v77, %v98
    %s100 = scalar_lea.vmem %s5, %s85
    %101 = vst [vmem:[%s100] sm:$0xff] %v98
    %v102 = vadd.f32 %v80, %v99
    %s103 = scalar_lea.vmem %s4, 16
    %v104 = vld [vmem:[%s103] sm:$0xff]
    %v105 = vmul.f32 %v98, %v104
    %v106 = vadd.f32 %v84, %v105
    %s107 = sadd.s32 24, %s43
    %s108 = scalar_lea.vmem %s0, %s107
    %v109 = vld [vmem:[%s108] sm:$0xff]
    %vm110 = vcmp.lt.f32.partialorder 3.0, %v42
    %v111 = vsel %vm110, 0.0, %v109
    %v112 = vmul.f32 %v27, %v91
    %v113 = vadd.f32 %v112, %v111
    %s114 = scalar_lea.vmem %s2, 24
    %v115 = vld [vmem:[%s114] sm:$0xff]
    %v116 = vmul.f32 %v115, %v40
    %v117 = vadd.f32 %v116, 1.0
    %v118 = vsub.f32 %v113, %v117
    %vm119 = vcmp.gt.f32.partialorder %v118, 0.0
    %v120 = vsel %vm119, %v99, 0.0
    %v121 = vsub.f32 %v99, %v120
    %s122 = scalar_lea.vmem %s5, %s107
    %123 = vst [vmem:[%s122] sm:$0xff] %v120
    %v124 = vadd.f32 %v102, %v121
    %s125 = scalar_lea.vmem %s4, 24
    %v126 = vld [vmem:[%s125] sm:$0xff]
    %v127 = vmul.f32 %v120, %v126
    %v128 = vadd.f32 %v106, %v127
    %v129 = vsub.f32 1.0, %v121
    %v130 = vmul.f32 %v28, %v40
    %v131 = vadd.f32 %v130, %v128
    %v132 = vmul.f32 %v113, %v121
    %v133 = vmul.f32 %v124, %v129
  $region30: #{_lambda_.1} parent=0 // loop_footer
    %s39 = sadd.s32 1, %s35
  $region31: #{_lambda_.1} parent=0 // loop_footer_branch
    %34 = sbr.rel target = $region27
  $region32: #{_lambda_.1} parent=0 // loop_exit
    _
  %134 = vst [vmem:[#allocation2] sm:$0xff] %v40
  %135 = vst [vmem:[%s30] sm:$0xff] %v41
  %136 = vst [vmem:[%s32] sm:$0xff] %v42
  // Predicated region
  $region33: #{_lambda_.1} parent=0 // pred_check
    _
  $region34: #{_lambda_.1} parent=0 // pred_check_branch
    %138 = sbr.rel (0) target = $region36
  $region35: #{_lambda_.1} parent=0 // pred_region
    _
  $region36: #{_lambda_.1} parent=0 // pred_fallthru
    _
  // Predicated region
  $region37: #{_lambda_.1} parent=0 // pred_check
    _
  $region38: #{_lambda_.1} parent=0 // pred_check_branch
    %140 = sbr.rel (0) target = $region40
  $region39: #{_lambda_.1} parent=0 // pred_region
    _
  $region40: #{_lambda_.1} parent=0 // pred_fallthru
    _

</llo_original>
